<compile_context>
chip_gen: v5e
topology: v5e:2x2
jax: 0.10.0
libtpu: 0.0.40
codegen_flags: <defaults>
</compile_context>

<pallas_src>
import functools
import math

import jax
import jax.numpy as jnp
from jax.experimental import pallas as pl
from jax.experimental.pallas import tpu as pltpu

LN_EPS = 1e-12


def self_attention_kernel(x_ref, mask_ref, wqkv_ref, bqkv_ref, wo_ref, bo_ref,
                          gamma_ref, beta_ref, out_ref, qkv_ref,
                          *, num_heads, approx_recip):
    # x_ref    : (S, H)  f32  full token slab for this batch row (resident across q tiles)
    # mask_ref : (1, S)  f32  additive attention mask for this batch row
    # wqkv_ref : (H, 3H)      pre-transposed fused Q/K/V weight (1/sqrt(hd) folded into Q)
    # bqkv_ref : (1, 3H) f32  fused Q/K/V bias (Q part pre-scaled)
    # wo_ref   : (H, H)       pre-transposed dense weight
    # bo/gamma/beta : (1, H) f32
    # out_ref  : (tq, H) f32  current query tile of the output
    # qkv_ref  : (S, 3H)      VMEM scratch, persists across q tiles of one batch row
    S, H = x_ref.shape
    tq = out_ref.shape[0]
    hd = H // num_heads
    md = wqkv_ref.dtype          # MXU operand dtype (f32 or bf16)

    qi = pl.program_id(1)

    # --- fused Q/K/V projection, computed once per batch row (q axis is "arbitrary") ---
    @pl.when(qi == 0)
    def _():
        proj = jnp.dot(x_ref[...].astype(md), wqkv_ref[...],
                       preferred_element_type=jnp.float32) + bqkv_ref[...]
        qkv_ref[...] = proj.astype(qkv_ref.dtype)

    row0 = pl.multiple_of(qi * tq, tq)
    q_tile = qkv_ref[pl.ds(row0, tq), :]        # (tq, 3H); only the first H lanes (Q) used
    mask = mask_ref[...]                        # (1, S), broadcasts over query rows

    hidden = jnp.zeros((tq, H), dtype=jnp.float32)
    # TODO(synk): for num_heads >= 8, move heads onto a grid axis / fori_loop to
    # bound live ranges instead of this static unroll.
    for h in range(num_heads):
        lo = h * hd
        hi = lo + hd
        qh = q_tile[:, lo:hi]                         # (tq, hd), pre-scaled by 1/sqrt(hd)
        kh = qkv_ref[:, H + lo:H + hi]                # (S, hd)
        vh = qkv_ref[:, 2 * H + lo:2 * H + hi]        # (S, hd)

        # Contract last-vs-last: K feeds the MXU directly, no XLU transpose.
        scores = jax.lax.dot_general(
            qh, kh, (((1,), (1,)), ((), ())),
            preferred_element_type=jnp.float32)       # (tq, S)
        scores = scores + mask

        m = jnp.max(scores, axis=-1, keepdims=True)
        p = jnp.exp(scores - m)                       # unnormalized probs
        denom = jnp.sum(p, axis=-1, keepdims=True)    # (tq, 1)
        # attn_dropout: identity (eval mode)

        ctx_h = jnp.dot(p.astype(md), vh,
                        preferred_element_type=jnp.float32)      # (tq, hd)
        # Deferred softmax normalization: (tq, hd) multiply instead of (tq, S) divide.
        ctx_h = ctx_h * pl.reciprocal(denom, approx=approx_recip)

        # Accumulate the output projection per head (no lane-dim head concat).
        hidden = hidden + jnp.dot(ctx_h.astype(md), wo_ref[lo:hi, :],
                                  preferred_element_type=jnp.float32)

    hidden = hidden + bo_ref[...]
    # out_dropout: identity (eval mode)
    y = hidden + x_ref[pl.ds(row0, tq), :]            # residual

    # --- TF-style LayerNorm over the hidden (last) axis ---
    u = jnp.mean(y, axis=-1, keepdims=True)
    d = y - u
    var = jnp.mean(d * d, axis=-1, keepdims=True)
    normed = d * jax.lax.rsqrt(var + LN_EPS)
    out_ref[...] = (gamma_ref[...] * normed + beta_ref[...]).astype(out_ref.dtype)


def prepare_attention_params(params, num_heads, mxu_dtype=jnp.float32):
    """Build fused / pre-transposed weights once (hoisted out of the forward path)."""
    H = params["wq"].shape[0]
    hd = H // num_heads
    scale = 1.0 / math.sqrt(hd)
    # Fold 1/sqrt(head_size) into the Q columns; PyTorch Linear stores W as (out, in).
    wqkv = jnp.concatenate(
        [params["wq"].T * scale, params["wk"].T, params["wv"].T], axis=1)   # (H, 3H)
    bqkv = jnp.concatenate(
        [params["bq"] * scale, params["bk"], params["bv"]]).reshape(1, 3 * H)
    return {
        "wqkv": wqkv.astype(mxu_dtype),
        "bqkv": bqkv.astype(jnp.float32),
        "wo": params["wo"].T.astype(mxu_dtype),                             # (H, H)
        "bo": params["bo"].reshape(1, H).astype(jnp.float32),
        "gamma": params["gamma"].reshape(1, H).astype(jnp.float32),
        "beta": params["beta"].reshape(1, H).astype(jnp.float32),
    }


def _pick_q_tile(S):
    for cand in (256, 128, 64, 32, 16, 8):
        if S % cand == 0:
            return cand
    return S


def _vmem_limit_bytes(S, H, tq, mxu_itemsize):
    weights = 2 * ((3 * H * H + H * H) * mxu_itemsize + (3 * H + 3 * H) * 4)
    blocks = 2 * (S * H * 4) + 2 * (tq * H * 4) + 2 * (S * 4)   # x/out double-buffered, mask
    scratch = S * 3 * H * mxu_itemsize                          # resident QKV scratch
    working = 2 * (tq * S * 4) + 4 * (tq * H * 4)               # scores + (tq,H) temporaries
    est = weights + blocks + scratch + working + (4 << 20)
    # Floor at the smallest default scoped limit, cap at v7x's 64 MiB/TC ceiling.
    return int(min(64 << 20, max(32 << 20, est)))


def self_attention_forward(x, attention_mask, prep, num_heads):
    B, S, H = x.shape
    assert H % num_heads == 0
    tq = _pick_q_tile(S)
    n_qt = S // tq
    mxu_dtype = prep["wqkv"].dtype
    approx_recip = bool(mxu_dtype != jnp.float32)   # EUP approx only on the bf16 path

    # (B, 1, 1, S) additive mask -> (B, 1, S) for a lane-dense per-row block.
    mask3d = attention_mask.reshape(B, 1, S).astype(jnp.float32)

    kernel = functools.partial(self_attention_kernel, num_heads=num_heads,
                               approx_recip=approx_recip)

    return pl.pallas_call(
        kernel,
        out_shape=jax.ShapeDtypeStruct((B, S, H), jnp.float32),
        grid_spec=pltpu.PrefetchScalarGridSpec(
            num_scalar_prefetch=0,
            grid=(B, n_qt),
            in_specs=[
                pl.BlockSpec((None, S, H), lambda b, q: (b, 0, 0)),   # x (resident per batch row)
                pl.BlockSpec((None, 1, S), lambda b, q: (b, 0, 0)),   # attn mask row
                pl.BlockSpec((H, 3 * H), lambda b, q: (0, 0)),        # fused QKV weight (resident)
                pl.BlockSpec((1, 3 * H), lambda b, q: (0, 0)),        # fused QKV bias
                pl.BlockSpec((H, H), lambda b, q: (0, 0)),            # dense weight (resident)
                pl.BlockSpec((1, H), lambda b, q: (0, 0)),            # dense bias
                pl.BlockSpec((1, H), lambda b, q: (0, 0)),            # LN gamma
                pl.BlockSpec((1, H), lambda b, q: (0, 0)),            # LN beta
            ],
            out_specs=pl.BlockSpec((None, tq, H), lambda b, q: (b, q, 0)),
            scratch_shapes=[pltpu.VMEM((S, 3 * H), mxu_dtype)],       # per-batch-row QKV
        ),
        compiler_params=pltpu.CompilerParams(
            dimension_semantics=("parallel", "arbitrary"),
            vmem_limit_bytes=_vmem_limit_bytes(S, H, tq, mxu_dtype.itemsize)),
    )(x, mask3d, prep["wqkv"], prep["bqkv"], prep["wo"], prep["bo"],
      prep["gamma"], prep["beta"])


def reference_forward(x, attention_mask, params, num_heads):
    """Pure-JAX reference mirroring the PyTorch module (eval mode)."""
    B, S, H = x.shape
    hd = H // num_heads
    hp = jax.lax.Precision.HIGHEST

    q = jnp.dot(x, params["wq"].T, precision=hp) + params["bq"]
    k = jnp.dot(x, params["wk"].T, precision=hp) + params["bk"]
    v = jnp.dot(x, params["wv"].T, precision=hp) + params["bv"]

    def split(t):
        return t.reshape(B, S, num_heads, hd).transpose(0, 2, 1, 3)

    q, k, v = split(q), split(k), split(v)

    scores = jnp.einsum("bhqd,bhkd->bhqk", q, k, precision=hp) / math.sqrt(hd)
    scores = scores + attention_mask               # (B,1,1,S) broadcast
    probs = jax.nn.softmax(scores, axis=-1)
    ctx = jnp.einsum("bhqk,bhkd->bhqd", probs, v, precision=hp)
    ctx = ctx.transpose(0, 2, 1, 3).reshape(B, S, H)

    hidden = jnp.dot(ctx, params["wo"].T, precision=hp) + params["bo"]
    y = hidden + x
    u = y.mean(-1, keepdims=True)
    s = ((y - u) ** 2).mean(-1, keepdims=True)
    normed = (y - u) / jnp.sqrt(s + LN_EPS)
    return params["gamma"] * normed + params["beta"]


if __name__ == "__main__":
    # Small, module-consistent shapes.
    B = 2            # batch
    S = 8            # seq length
    H = 32           # hidden_size
    NUM_HEADS = 2    # num_attention_heads (head_size = 16)

    key = jax.random.PRNGKey(0)
    kx, kq, kk, kv, ko, kbq, kbk, kbv, kbo = jax.random.split(key, 9)

    params = {
        "wq": 0.05 * jax.random.normal(kq, (H, H), dtype=jnp.float32),
        "bq": 0.05 * jax.random.normal(kbq, (H,), dtype=jnp.float32),
        "wk": 0.05 * jax.random.normal(kk, (H, H), dtype=jnp.float32),
        "bk": 0.05 * jax.random.normal(kbk, (H,), dtype=jnp.float32),
        "wv": 0.05 * jax.random.normal(kv, (H, H), dtype=jnp.float32),
        "bv": 0.05 * jax.random.normal(kbv, (H,), dtype=jnp.float32),
        "wo": 0.05 * jax.random.normal(ko, (H, H), dtype=jnp.float32),
        "bo": 0.05 * jax.random.normal(kbo, (H,), dtype=jnp.float32),
        "gamma": jnp.ones((H,), dtype=jnp.float32),
        "beta": jnp.zeros((H,), dtype=jnp.float32),
    }

    x = jax.random.normal(kx, (B, S, H), dtype=jnp.float32)

    # BERT-style additive mask: last 2 positions of batch row 1 are padded.
    valid = jnp.ones((B, S), dtype=jnp.float32)
    valid = valid.at[1, -2:].set(0.0)
    attention_mask = ((1.0 - valid) * -10000.0).reshape(B, 1, 1, S)

    ref = reference_forward(x, attention_mask, params, NUM_HEADS)

    # --- exact path: f32 MXU operands (matches the module's f32 semantics) ---
    prep_f32 = prepare_attention_params(params, NUM_HEADS, mxu_dtype=jnp.float32)
    out_f32 = jax.block_until_ready(
        self_attention_forward(x, attention_mask, prep_f32, NUM_HEADS))
    assert out_f32.shape == (B, S, H)
    # In-kernel matmuls use default MXU precision vs. the HIGHEST-precision reference.
    assert jnp.allclose(out_f32, ref, atol=1e-4, rtol=1e-4), "f32 kernel mismatch"

    # --- throughput path: bf16 MXU operands, f32 accumulation (v6e/v7x config) ---
    prep_bf16 = prepare_attention_params(params, NUM_HEADS, mxu_dtype=jnp.bfloat16)
    out_bf16 = jax.block_until_ready(
        self_attention_forward(x, attention_mask, prep_bf16, NUM_HEADS))
    assert jnp.allclose(out_bf16, ref, atol=5e-2, rtol=5e-2), "bf16 kernel mismatch"

    print("KERNEL_OK")
</pallas_src>

<mosaic_0001>
module attributes {stable_mosaic.version = 11 : i64} {
  func.func @self_attention_kernel(%arg0: i32, %arg1: i32, %arg2: memref<1x8x32xf32, #tpu.memory_space<vmem>>, %arg3: memref<1x1x8xf32, #tpu.memory_space<vmem>>, %arg4: memref<32x96xf32, #tpu.memory_space<vmem>>, %arg5: memref<1x96xf32, #tpu.memory_space<vmem>>, %arg6: memref<32x32xf32, #tpu.memory_space<vmem>>, %arg7: memref<1x32xf32, #tpu.memory_space<vmem>>, %arg8: memref<1x32xf32, #tpu.memory_space<vmem>>, %arg9: memref<1x32xf32, #tpu.memory_space<vmem>>, %arg10: memref<1x8x32xf32, #tpu.memory_space<vmem>>, %arg11: memref<8x96xf32, #tpu.memory_space<vmem>>) attributes {dimension_semantics = [#tpu.dimension_semantics<parallel>, #tpu.dimension_semantics<arbitrary>], iteration_bounds = array<i64: 2, 1>, scalar_prefetch = 0 : i64, scratch_operands = 1 : i64, tpu.core_type = #tpu.core_type<tc>, window_params = [{transform_indices = @transform_0, window_bounds = array<i64: 1, 8, 32>}, {transform_indices = @transform_1, window_bounds = array<i64: 1, 1, 8>}, {pipeline_mode = #tpu.pipeline_mode<synchronous>, transform_indices = @transform_2, window_bounds = array<i64: 32, 96>}, {pipeline_mode = #tpu.pipeline_mode<synchronous>, transform_indices = @transform_3, window_bounds = array<i64: 1, 96>}, {pipeline_mode = #tpu.pipeline_mode<synchronous>, transform_indices = @transform_4, window_bounds = array<i64: 32, 32>}, {pipeline_mode = #tpu.pipeline_mode<synchronous>, transform_indices = @transform_5, window_bounds = array<i64: 1, 32>}, {pipeline_mode = #tpu.pipeline_mode<synchronous>, transform_indices = @transform_6, window_bounds = array<i64: 1, 32>}, {pipeline_mode = #tpu.pipeline_mode<synchronous>, transform_indices = @transform_7, window_bounds = array<i64: 1, 32>}, {transform_indices = @transform_8, window_bounds = array<i64: 1, 8, 32>}]} {
    %c0_i32 = arith.constant 0 : i32
    %0 = arith.cmpi eq, %arg1, %c0_i32 : i32
    %1 = arith.extui %0 : i1 to i32
    %c0_i32_0 = arith.constant 0 : i32
    %2 = arith.cmpi ne, %1, %c0_i32_0 : i32
    scf.if %2 {
      %c0_37 = arith.constant 0 : index
      %c0_38 = arith.constant 0 : index
      %c0_39 = arith.constant 0 : index
      %82 = vector.load %arg2[%c0_37, %c0_38, %c0_39] : memref<1x8x32xf32, #tpu.memory_space<vmem>>, vector<1x8x32xf32>
      %83 = vector.shape_cast %82 : vector<1x8x32xf32> to vector<8x32xf32>
      %c0_40 = arith.constant 0 : index
      %c0_41 = arith.constant 0 : index
      %84 = vector.load %arg4[%c0_40, %c0_41] : memref<32x96xf32, #tpu.memory_space<vmem>>, vector<32x96xf32>
      %cst_42 = arith.constant dense<0.000000e+00> : vector<8x96xf32>
      %85 = tpu.matmul %83, %84, %cst_42 {dimension_numbers = #tpu.dot_dimension_numbers<[1], [0], [0], [1], [0, 0, 1, 1], [], []>} : vector<8x32xf32>, vector<32x96xf32>, vector<8x96xf32> -> vector<8x96xf32>
      %c0_43 = arith.constant 0 : index
      %c0_44 = arith.constant 0 : index
      %86 = vector.load %arg5[%c0_43, %c0_44] : memref<1x96xf32, #tpu.memory_space<vmem>>, vector<1x96xf32>
      %87 = vector.broadcast %86 : vector<1x96xf32> to vector<8x96xf32>
      %88 = arith.addf %85, %87 : vector<8x96xf32>
      %c0_45 = arith.constant 0 : index
      %c0_46 = arith.constant 0 : index
      %89 = vector.load %arg11[%c0_45, %c0_46] : memref<8x96xf32, #tpu.memory_space<vmem>>, vector<8x96xf32>
      tpu.vector_store %arg11[%c0_45, %c0_46], %88 {strides = array<i32>} : memref<8x96xf32, #tpu.memory_space<vmem>>, vector<8x96xf32>,
    } else {
    }
    %c8_i32 = arith.constant 8 : i32
    %3 = arith.muli %arg1, %c8_i32 : i32
    %4 = tpu.assume_multiple %3, 8 : i32
    %5 = arith.index_cast %4 : i32 to index
    %c0 = arith.constant 0 : index
    %6 = vector.load %arg11[%5, %c0] : memref<8x96xf32, #tpu.memory_space<vmem>>, vector<8x96xf32>
    %c0_1 = arith.constant 0 : index
    %c0_2 = arith.constant 0 : index
    %c0_3 = arith.constant 0 : index
    %7 = vector.load %arg3[%c0_1, %c0_2, %c0_3] : memref<1x1x8xf32, #tpu.memory_space<vmem>>, vector<1x1x8xf32>
    %8 = vector.shape_cast %7 : vector<1x1x8xf32> to vector<1x8xf32>
    %cst = arith.constant 0.000000e+00 : f32
    %9 = vector.broadcast %cst : f32 to vector<8x32xf32>
    %10 = vector.extract_strided_slice %6 {offsets = [0, 0], sizes = [8, 16], strides = [1, 1]} : vector<8x96xf32> to vector<8x16xf32>
    %c0_4 = arith.constant 0 : index
    %c32 = arith.constant 32 : index
    %11 = vector.load %arg11[%c0_4, %c32] : memref<8x96xf32, #tpu.memory_space<vmem>>, vector<8x16xf32>
    %c0_5 = arith.constant 0 : index
    %c64 = arith.constant 64 : index
    %12 = vector.load %arg11[%c0_5, %c64] : memref<8x96xf32, #tpu.memory_space<vmem>>, vector<8x16xf32>
    %cst_6 = arith.constant dense<0.000000e+00> : vector<8x8xf32>
    %13 = tpu.matmul %10, %11, %cst_6 {dimension_numbers = #tpu.dot_dimension_numbers<[1], [1], [0], [0], [0, 0, 1, 0], [], []>} : vector<8x16xf32>, vector<8x16xf32>, vector<8x8xf32> -> vector<8x8xf32>
    %14 = vector.broadcast %8 : vector<1x8xf32> to vector<8x8xf32>
    %15 = arith.addf %13, %14 : vector<8x8xf32>
    %cst_7 = arith.constant dense<0xFF800000> : vector<8xf32>
    %16 = vector.multi_reduction <maximumf>, %15, %cst_7 [1] : vector<8x8xf32> to vector<8xf32>
    %17 = vector.shape_cast %16 : vector<8xf32> to vector<8x1xf32>
    %18 = vector.broadcast %17 : vector<8x1xf32> to vector<8x8xf32>
    %19 = arith.subf %15, %18 : vector<8x8xf32>
    %20 = math.exp %19 : vector<8x8xf32>
    %cst_8 = arith.constant dense<0.000000e+00> : vector<8xf32>
    %21 = vector.multi_reduction <add>, %20, %cst_8 [1] : vector<8x8xf32> to vector<8xf32>
    %22 = vector.shape_cast %21 : vector<8xf32> to vector<8x1xf32>
    %cst_9 = arith.constant dense<0.000000e+00> : vector<8x16xf32>
    %23 = tpu.matmul %20, %12, %cst_9 {dimension_numbers = #tpu.dot_dimension_numbers<[1], [0], [0], [1], [0, 0, 1, 1], [], []>} : vector<8x8xf32>, vector<8x16xf32>, vector<8x16xf32> -> vector<8x16xf32>
    %24 = tpu.reciprocal %22 : vector<8x1xf32> -> vector<8x1xf32>
    %25 = vector.broadcast %24 : vector<8x1xf32> to vector<8x16xf32>
    %26 = arith.mulf %23, %25 : vector<8x16xf32>
    %c0_10 = arith.constant 0 : index
    %c0_11 = arith.constant 0 : index
    %27 = vector.load %arg6[%c0_10, %c0_11] : memref<32x32xf32, #tpu.memory_space<vmem>>, vector<16x32xf32>
    %cst_12 = arith.constant dense<0.000000e+00> : vector<8x32xf32>
    %28 = tpu.matmul %26, %27, %cst_12 {dimension_numbers = #tpu.dot_dimension_numbers<[1], [0], [0], [1], [0, 0, 1, 1], [], []>} : vector<8x16xf32>, vector<16x32xf32>, vector<8x32xf32> -> vector<8x32xf32>
    %29 = arith.addf %9, %28 : vector<8x32xf32>
    %30 = vector.extract_strided_slice %6 {offsets = [0, 16], sizes = [8, 16], strides = [1, 1]} : vector<8x96xf32> to vector<8x16xf32>
    %c0_13 = arith.constant 0 : index
    %c48 = arith.constant 48 : index
    %31 = vector.load %arg11[%c0_13, %c48] : memref<8x96xf32, #tpu.memory_space<vmem>>, vector<8x16xf32>
    %c0_14 = arith.constant 0 : index
    %c80 = arith.constant 80 : index
    %32 = vector.load %arg11[%c0_14, %c80] : memref<8x96xf32, #tpu.memory_space<vmem>>, vector<8x16xf32>
    %cst_15 = arith.constant dense<0.000000e+00> : vector<8x8xf32>
    %33 = tpu.matmul %30, %31, %cst_15 {dimension_numbers = #tpu.dot_dimension_numbers<[1], [1], [0], [0], [0, 0, 1, 0], [], []>} : vector<8x16xf32>, vector<8x16xf32>, vector<8x8xf32> -> vector<8x8xf32>
    %34 = vector.broadcast %8 : vector<1x8xf32> to vector<8x8xf32>
    %35 = arith.addf %33, %34 : vector<8x8xf32>
    %cst_16 = arith.constant dense<0xFF800000> : vector<8xf32>
    %36 = vector.multi_reduction <maximumf>, %35, %cst_16 [1] : vector<8x8xf32> to vector<8xf32>
    %37 = vector.shape_cast %36 : vector<8xf32> to vector<8x1xf32>
    %38 = vector.broadcast %37 : vector<8x1xf32> to vector<8x8xf32>
    %39 = arith.subf %35, %38 : vector<8x8xf32>
    %40 = math.exp %39 : vector<8x8xf32>
    %cst_17 = arith.constant dense<0.000000e+00> : vector<8xf32>
    %41 = vector.multi_reduction <add>, %40, %cst_17 [1] : vector<8x8xf32> to vector<8xf32>
    %42 = vector.shape_cast %41 : vector<8xf32> to vector<8x1xf32>
    %cst_18 = arith.constant dense<0.000000e+00> : vector<8x16xf32>
    %43 = tpu.matmul %40, %32, %cst_18 {dimension_numbers = #tpu.dot_dimension_numbers<[1], [0], [0], [1], [0, 0, 1, 1], [], []>} : vector<8x8xf32>, vector<8x16xf32>, vector<8x16xf32> -> vector<8x16xf32>
    %44 = tpu.reciprocal %42 : vector<8x1xf32> -> vector<8x1xf32>
    %45 = vector.broadcast %44 : vector<8x1xf32> to vector<8x16xf32>
    %46 = arith.mulf %43, %45 : vector<8x16xf32>
    %c16 = arith.constant 16 : index
    %c0_19 = arith.constant 0 : index
    %47 = vector.load %arg6[%c16, %c0_19] : memref<32x32xf32, #tpu.memory_space<vmem>>, vector<16x32xf32>
    %cst_20 = arith.constant dense<0.000000e+00> : vector<8x32xf32>
    %48 = tpu.matmul %46, %47, %cst_20 {dimension_numbers = #tpu.dot_dimension_numbers<[1], [0], [0], [1], [0, 0, 1, 1], [], []>} : vector<8x16xf32>, vector<16x32xf32>, vector<8x32xf32> -> vector<8x32xf32>
    %49 = arith.addf %29, %48 : vector<8x32xf32>
    %c0_21 = arith.constant 0 : index
    %c0_22 = arith.constant 0 : index
    %50 = vector.load %arg7[%c0_21, %c0_22] : memref<1x32xf32, #tpu.memory_space<vmem>>, vector<1x32xf32>
    %51 = vector.broadcast %50 : vector<1x32xf32> to vector<8x32xf32>
    %52 = arith.addf %49, %51 : vector<8x32xf32>
    %c0_23 = arith.constant 0 : index
    %53 = arith.index_cast %4 : i32 to index
    %c0_24 = arith.constant 0 : index
    %54 = vector.load %arg2[%c0_23, %53, %c0_24] : memref<1x8x32xf32, #tpu.memory_space<vmem>>, vector<1x8x32xf32>
    %55 = vector.shape_cast %54 : vector<1x8x32xf32> to vector<8x32xf32>
    %56 = arith.addf %52, %55 : vector<8x32xf32>
    %cst_25 = arith.constant dense<0.000000e+00> : vector<8xf32>
    %57 = vector.multi_reduction <add>, %56, %cst_25 [1] : vector<8x32xf32> to vector<8xf32>
    %58 = vector.shape_cast %57 : vector<8xf32> to vector<8x1xf32>
    %cst_26 = arith.constant 3.200000e+01 : f32
    %59 = vector.broadcast %cst_26 : f32 to vector<8x1xf32>
    %60 = arith.divf %58, %59 : vector<8x1xf32>
    %61 = vector.broadcast %60 : vector<8x1xf32> to vector<8x32xf32>
    %62 = arith.subf %56, %61 : vector<8x32xf32>
    %63 = arith.mulf %62, %62 : vector<8x32xf32>
    %cst_27 = arith.constant dense<0.000000e+00> : vector<8xf32>
    %64 = vector.multi_reduction <add>, %63, %cst_27 [1] : vector<8x32xf32> to vector<8xf32>
    %65 = vector.shape_cast %64 : vector<8xf32> to vector<8x1xf32>
    %cst_28 = arith.constant 3.200000e+01 : f32
    %66 = vector.broadcast %cst_28 : f32 to vector<8x1xf32>
    %67 = arith.divf %65, %66 : vector<8x1xf32>
    %cst_29 = arith.constant 9.99999996E-13 : f32
    %68 = vector.broadcast %cst_29 : f32 to vector<8x1xf32>
    %69 = arith.addf %67, %68 : vector<8x1xf32>
    %70 = math.rsqrt %69 : vector<8x1xf32>
    %71 = vector.broadcast %70 : vector<8x1xf32> to vector<8x32xf32>
    %72 = arith.mulf %62, %71 : vector<8x32xf32>
    %c0_30 = arith.constant 0 : index
    %c0_31 = arith.constant 0 : index
    %73 = vector.load %arg8[%c0_30, %c0_31] : memref<1x32xf32, #tpu.memory_space<vmem>>, vector<1x32xf32>
    %74 = vector.broadcast %73 : vector<1x32xf32> to vector<8x32xf32>
    %75 = arith.mulf %74, %72 : vector<8x32xf32>
    %c0_32 = arith.constant 0 : index
    %c0_33 = arith.constant 0 : index
    %76 = vector.load %arg9[%c0_32, %c0_33] : memref<1x32xf32, #tpu.memory_space<vmem>>, vector<1x32xf32>
    %77 = vector.broadcast %76 : vector<1x32xf32> to vector<8x32xf32>
    %78 = arith.addf %75, %77 : vector<8x32xf32>
    %c0_34 = arith.constant 0 : index
    %c0_35 = arith.constant 0 : index
    %c0_36 = arith.constant 0 : index
    %79 = vector.load %arg10[%c0_34, %c0_35, %c0_36] : memref<1x8x32xf32, #tpu.memory_space<vmem>>, vector<1x8x32xf32>
    %80 = vector.shape_cast %79 : vector<1x8x32xf32> to vector<8x32xf32>
    %81 = vector.shape_cast %78 : vector<8x32xf32> to vector<1x8x32xf32>
    tpu.vector_store %arg10[%c0_34, %c0_35, %c0_36], %81 {strides = array<i32>} : memref<1x8x32xf32, #tpu.memory_space<vmem>>, vector<1x8x32xf32>,
    return
  }
  func.func @transform_0(%arg0: i32, %arg1: i32) -> (i32, i32, i32) {
    %c0_i32 = arith.constant 0 : i32
    %c0_i32_0 = arith.constant 0 : i32
    %c0_i32_1 = arith.constant 0 : i32
    return %arg0, %c0_i32, %c0_i32_0 : i32, i32, i32
  }
  func.func @transform_1(%arg0: i32, %arg1: i32) -> (i32, i32, i32) {
    %c0_i32 = arith.constant 0 : i32
    %c0_i32_0 = arith.constant 0 : i32
    %c0_i32_1 = arith.constant 0 : i32
    return %arg0, %c0_i32, %c0_i32_0 : i32, i32, i32
  }
  func.func @transform_2(%arg0: i32, %arg1: i32) -> (i32, i32) {
    %c0_i32 = arith.constant 0 : i32
    %c0_i32_0 = arith.constant 0 : i32
    %c0_i32_1 = arith.constant 0 : i32
    return %c0_i32, %c0_i32_0 : i32, i32
  }
  func.func @transform_3(%arg0: i32, %arg1: i32) -> (i32, i32) {
    %c0_i32 = arith.constant 0 : i32
    %c0_i32_0 = arith.constant 0 : i32
    %c0_i32_1 = arith.constant 0 : i32
    return %c0_i32, %c0_i32_0 : i32, i32
  }
  func.func @transform_4(%arg0: i32, %arg1: i32) -> (i32, i32) {
    %c0_i32 = arith.constant 0 : i32
    %c0_i32_0 = arith.constant 0 : i32
    %c0_i32_1 = arith.constant 0 : i32
    return %c0_i32, %c0_i32_0 : i32, i32
  }
  func.func @transform_5(%arg0: i32, %arg1: i32) -> (i32, i32) {
    %c0_i32 = arith.constant 0 : i32
    %c0_i32_0 = arith.constant 0 : i32
    %c0_i32_1 = arith.constant 0 : i32
    return %c0_i32, %c0_i32_0 : i32, i32
  }
  func.func @transform_6(%arg0: i32, %arg1: i32) -> (i32, i32) {
    %c0_i32 = arith.constant 0 : i32
    %c0_i32_0 = arith.constant 0 : i32
    %c0_i32_1 = arith.constant 0 : i32
    return %c0_i32, %c0_i32_0 : i32, i32
  }
  func.func @transform_7(%arg0: i32, %arg1: i32) -> (i32, i32) {
    %c0_i32 = arith.constant 0 : i32
    %c0_i32_0 = arith.constant 0 : i32
    %c0_i32_1 = arith.constant 0 : i32
    return %c0_i32, %c0_i32_0 : i32, i32
  }
  func.func @transform_8(%arg0: i32, %arg1: i32) -> (i32, i32, i32) {
    %c0_i32 = arith.constant 0 : i32
    %c0_i32_0 = arith.constant 0 : i32
    return %arg0, %arg1, %c0_i32 : i32, i32, i32
  }
}

</mosaic_0001>

<llo_original>
// kernel: tpu_custom_call.1
$region0: #{tpu_custom_call.1}
  #allocation0 [shape = 'u32[]', space=smem, size = 0x4, offset = 0x4, fixed_abs, tag = 'smem constant byte address 0x4 - core index']
  #allocation1 [shape = 'u32[72,128]{1,0:T(1,128)}', space=vmem, size = 0x9000, scoped, tag = 'internal scratch']
  #allocation2 [shape = 'f32[8,96]{1,0:T(8,128)}', space=vmem, size = 0x1000, scoped, tag = 'scratch operand']
  %s0 = inlined_call_operand.hbm [shape: f32[2,8,32], index: 0, kind: input, shape index: {}]
  %s1 = inlined_call_operand.hbm [shape: f32[2,1,8], index: 1, kind: input, shape index: {}]
  %s2 = inlined_call_operand.hbm [shape: f32[32,96], index: 2, kind: input, shape index: {}]
  %s3 = inlined_call_operand.vmem [shape: f32[1,96], index: 3, kind: input, shape index: {}]
  %s4 = inlined_call_operand.hbm [shape: f32[32,32], index: 4, kind: input, shape index: {}]
  %s5 = inlined_call_operand.vmem [shape: f32[1,32], index: 5, kind: input, shape index: {}]
  %s6 = inlined_call_operand.vmem [shape: f32[1,32], index: 6, kind: input, shape index: {}]
  %s7 = inlined_call_operand.vmem [shape: f32[1,32], index: 7, kind: input, shape index: {}]
  %s8 = inlined_call_operand.hbm [shape: f32[2,8,32], index: 8, kind: output, shape index: {}]
  %s9 = sld [smem:[#allocation0]]
  $region85: #{tpu_custom_call.1} parent=0
    _
  %s11 = ssub.s32 1, %s9
  %s12 = scalar_select 0, %s11, %s9
  $region1: #{tpu_custom_call.1} parent=0
    #allocation3 [shape = 'u8[8192]{0}', space=vmem, size = 0x2000, scoped, tag = 'input window, operand 0']
    #allocation4 [shape = 's32[2]{0}', space=sflag, size = 0x8, scoped, tag = 'scoped memory for tpu_custom_call.1']
    #allocation5 [shape = 's32[2]{0}', space=sflag, size = 0x8, scoped, tag = 'scoped memory for tpu_custom_call.1']
    #allocation6 [shape = 'u8[1024]{0}', space=vmem, size = 0x400, scoped, tag = 'input window, operand 1']
    #allocation7 [shape = 's32[2]{0}', space=sflag, size = 0x8, scoped, tag = 'scoped memory for tpu_custom_call.1']
    #allocation8 [shape = 'u8[16384]{0}', space=vmem, size = 0x4000, scoped, tag = 'input window, operand 2, single buffered']
    #allocation9 [shape = 'u8[16384]{0}', space=vmem, size = 0x4000, scoped, tag = 'input window, operand 4, single buffered']
    #allocation10 [shape = 's32[1]{0}', space=sflag, size = 0x4, scoped, tag = 'scoped memory for tpu_custom_call.1']
    #allocation11 [shape = 'u8[8192]{0}', space=vmem, size = 0x2000, scoped, tag = 'output window, operand 0']
    %13 = vsyncpa [#allocation4], 0
    %s14 = scalar_lea.sflag [#allocation4], 1
    %15 = vsyncpa %s14, 0
    %16 = vsyncpa [#allocation7], 0
    %s17 = scalar_lea.sflag [#allocation7], 1
    %18 = vsyncpa %s17, 0
    %19 = vsyncpa [#allocation10], 0
    %20 = vsyncpa [#allocation5], 0
    %s21 = scalar_lea.sflag [#allocation5], 1
    %22 = vsyncpa %s21, 0
    loop: start=0, step=1, limit=4
    $region2: #{tpu_custom_call.1} parent=1 // loop_pre_header
      _
    $region3: #{tpu_custom_call.1} parent=1 // loop_header
      %s24 = sphi 0, %s28
      %p25 = scmp.ge.s32.totalorder %s24, 4
      %s31 = sphi 0, %s43
      %s32 = sphi 0, %s39
      %s33 = sphi 0, %s31
      %s34 = sphi 0, %s32
      %s35 = sphi 0, %s33
      %s36 = sphi 0, %s34
      %s46 = sphi 0, %s48
      %s49 = sphi 0, %s46
      %s50 = sphi 0, %s49
      %s66 = sphi 0, %s50
      %s72 = sphi 0, %s74
      %s75 = sphi 0, %s72
      %s76 = sphi 0, %s75
      %s92 = sphi 0, %s76
      %s96 = sphi 0, %s96
      %s98 = sphi 0, %s96
      %s99 = sphi 0, %s98
      %s113 = sphi 0, %s99
      %s117 = sphi 0, %s117
      %s119 = sphi 0, %s117
      %s120 = sphi 0, %s119
      %s134 = sphi 0, %s120
      %s138 = sphi 0, %s138
      %s140 = sphi 0, %s138
      %s141 = sphi 0, %s140
      %s155 = sphi 0, %s141
      %s159 = sphi 0, %s159
      %s161 = sphi 0, %s159
      %s162 = sphi 0, %s161
      %s176 = sphi 0, %s162
      %s180 = sphi 0, %s180
      %s182 = sphi 0, %s180
      %s183 = sphi 0, %s182
      %s197 = sphi 0, %s183
      %s201 = sphi 0, %s201
      %s203 = sphi 0, %s201
      %s204 = sphi 0, %s203
      %s218 = sphi 0, %s204
      %s226 = sphi 0, %s228
      %s229 = sphi 0, %s226
      %s230 = sphi 0, %s229
      %s246 = sphi 0, %s230
    $region4: #{tpu_custom_call.1} parent=1 // loop_header_branch
      %27 = sbr.rel (%p25) target = $region8
    $region5: #{tpu_custom_call.1} parent=1 // loop_body
      %s29 = ssub.s32 %s24, 1
      %s30 = ssub.s32 %s24, 2
      %s37 = sadd.s32 1, %s32
      %p38 = scmp.ge.s32.totalorder %s37, 1
      %s39 = scalar_select %p38, 0, %s37
      %s40 = sadd.s32 1, %s31
      %s41 = scalar_select %p38, %s40, %s31
      %p42 = scmp.ge.s32.totalorder %s41, 2
      %s43 = scalar_select %p42, 0, %s41
      %s44 = ssub.s32 %s31, %s43
      %p45 = scmp.eq.s32.totalorder %s44, 0
      %s47 = sadd.s32 %s46, 1
      %s48 = scalar_select %p45, %s46, %s47
      %p51 = pneg %p45
      %p52 = scmp.eq.s32.totalorder %s24, 1
      %p53 = por %p51, %p52
      %p54 = scmp.ne.s32.totalorder %s46, %s49
      %p55 = scmp.eq.s32.totalorder %s24, 0
      %p56 = por %p54, %p55
      %p57 = scmp.ne.s32.totalorder %s46, %s49
      %p58 = scmp.eq.s32.totalorder %s29, 1
      %p59 = por %p57, %p58
      %p60 = scmp.ne.s32.totalorder %s49, %s50
      %p61 = scmp.eq.s32.totalorder %s29, 0
      %p62 = por %p60, %p61
      %p63 = scmp.ne.s32.totalorder %s49, %s50
      %p64 = scmp.eq.s32.totalorder %s30, 1
      %p65 = por %p63, %p64
      %p67 = scmp.ne.s32.totalorder %s50, %s66
      %p68 = scmp.eq.s32.totalorder %s30, 0
      %p69 = por %p67, %p68
      %s70 = ssub.s32 %s31, %s43
      %p71 = scmp.eq.s32.totalorder %s70, 0
      %s73 = sadd.s32 %s72, 1
      %s74 = scalar_select %p71, %s72, %s73
      %p77 = pneg %p71
      %p78 = scmp.eq.s32.totalorder %s24, 1
      %p79 = por %p77, %p78
      %p80 = scmp.ne.s32.totalorder %s72, %s75
      %p81 = scmp.eq.s32.totalorder %s24, 0
      %p82 = por %p80, %p81
      %p83 = scmp.ne.s32.totalorder %s72, %s75
      %p84 = scmp.eq.s32.totalorder %s29, 1
      %p85 = por %p83, %p84
      %p86 = scmp.ne.s32.totalorder %s75, %s76
      %p87 = scmp.eq.s32.totalorder %s29, 0
      %p88 = por %p86, %p87
      %p89 = scmp.ne.s32.totalorder %s75, %s76
      %p90 = scmp.eq.s32.totalorder %s30, 1
      %p91 = por %p89, %p90
      %p93 = scmp.ne.s32.totalorder %s76, %s92
      %p94 = scmp.eq.s32.totalorder %s30, 0
      %p95 = por %p93, %p94
      %s97 = sadd.s32 %s96, 1
      %p100 = scmp.eq.s32.totalorder %s24, 1
      %p101 = scmp.ne.s32.totalorder %s96, %s98
      %p102 = scmp.eq.s32.totalorder %s24, 0
      %p103 = por %p101, %p102
      %p104 = scmp.ne.s32.totalorder %s96, %s98
      %p105 = scmp.eq.s32.totalorder %s29, 1
      %p106 = por %p104, %p105
      %p107 = scmp.ne.s32.totalorder %s98, %s99
      %p108 = scmp.eq.s32.totalorder %s29, 0
      %p109 = por %p107, %p108
      %p110 = scmp.ne.s32.totalorder %s98, %s99
      %p111 = scmp.eq.s32.totalorder %s30, 1
      %p112 = por %p110, %p111
      %p114 = scmp.ne.s32.totalorder %s99, %s113
      %p115 = scmp.eq.s32.totalorder %s30, 0
      %p116 = por %p114, %p115
      %s118 = sadd.s32 %s117, 1
      %p121 = scmp.eq.s32.totalorder %s24, 1
      %p122 = scmp.ne.s32.totalorder %s117, %s119
      %p123 = scmp.eq.s32.totalorder %s24, 0
      %p124 = por %p122, %p123
      %p125 = scmp.ne.s32.totalorder %s117, %s119
      %p126 = scmp.eq.s32.totalorder %s29, 1
      %p127 = por %p125, %p126
      %p128 = scmp.ne.s32.totalorder %s119, %s120
      %p129 = scmp.eq.s32.totalorder %s29, 0
      %p130 = por %p128, %p129
      %p131 = scmp.ne.s32.totalorder %s119, %s120
      %p132 = scmp.eq.s32.totalorder %s30, 1
      %p133 = por %p131, %p132
      %p135 = scmp.ne.s32.totalorder %s120, %s134
      %p136 = scmp.eq.s32.totalorder %s30, 0
      %p137 = por %p135, %p136
      %s139 = sadd.s32 %s138, 1
      %p142 = scmp.eq.s32.totalorder %s24, 1
      %p143 = scmp.ne.s32.totalorder %s138, %s140
      %p144 = scmp.eq.s32.totalorder %s24, 0
      %p145 = por %p143, %p144
      %p146 = scmp.ne.s32.totalorder %s138, %s140
      %p147 = scmp.eq.s32.totalorder %s29, 1
      %p148 = por %p146, %p147
      %p149 = scmp.ne.s32.totalorder %s140, %s141
      %p150 = scmp.eq.s32.totalorder %s29, 0
      %p151 = por %p149, %p150
      %p152 = scmp.ne.s32.totalorder %s140, %s141
      %p153 = scmp.eq.s32.totalorder %s30, 1
      %p154 = por %p152, %p153
      %p156 = scmp.ne.s32.totalorder %s141, %s155
      %p157 = scmp.eq.s32.totalorder %s30, 0
      %p158 = por %p156, %p157
      %s160 = sadd.s32 %s159, 1
      %p163 = scmp.eq.s32.totalorder %s24, 1
      %p164 = scmp.ne.s32.totalorder %s159, %s161
      %p165 = scmp.eq.s32.totalorder %s24, 0
      %p166 = por %p164, %p165
      %p167 = scmp.ne.s32.totalorder %s159, %s161
      %p168 = scmp.eq.s32.totalorder %s29, 1
      %p169 = por %p167, %p168
      %p170 = scmp.ne.s32.totalorder %s161, %s162
      %p171 = scmp.eq.s32.totalorder %s29, 0
      %p172 = por %p170, %p171
      %p173 = scmp.ne.s32.totalorder %s161, %s162
      %p174 = scmp.eq.s32.totalorder %s30, 1
      %p175 = por %p173, %p174
      %p177 = scmp.ne.s32.totalorder %s162, %s176
      %p178 = scmp.eq.s32.totalorder %s30, 0
      %p179 = por %p177, %p178
      %s181 = sadd.s32 %s180, 1
      %p184 = scmp.eq.s32.totalorder %s24, 1
      %p185 = scmp.ne.s32.totalorder %s180, %s182
      %p186 = scmp.eq.s32.totalorder %s24, 0
      %p187 = por %p185, %p186
      %p188 = scmp.ne.s32.totalorder %s180, %s182
      %p189 = scmp.eq.s32.totalorder %s29, 1
      %p190 = por %p188, %p189
      %p191 = scmp.ne.s32.totalorder %s182, %s183
      %p192 = scmp.eq.s32.totalorder %s29, 0
      %p193 = por %p191, %p192
      %p194 = scmp.ne.s32.totalorder %s182, %s183
      %p195 = scmp.eq.s32.totalorder %s30, 1
      %p196 = por %p194, %p195
      %p198 = scmp.ne.s32.totalorder %s183, %s197
      %p199 = scmp.eq.s32.totalorder %s30, 0
      %p200 = por %p198, %p199
      %s202 = sadd.s32 %s201, 1
      %p205 = scmp.eq.s32.totalorder %s24, 1
      %p206 = scmp.ne.s32.totalorder %s201, %s203
      %p207 = scmp.eq.s32.totalorder %s24, 0
      %p208 = por %p206, %p207
      %p209 = scmp.ne.s32.totalorder %s201, %s203
      %p210 = scmp.eq.s32.totalorder %s29, 1
      %p211 = por %p209, %p210
      %p212 = scmp.ne.s32.totalorder %s203, %s204
      %p213 = scmp.eq.s32.totalorder %s29, 0
      %p214 = por %p212, %p213
      %p215 = scmp.ne.s32.totalorder %s203, %s204
      %p216 = scmp.eq.s32.totalorder %s30, 1
      %p217 = por %p215, %p216
      %p219 = scmp.ne.s32.totalorder %s204, %s218
      %p220 = scmp.eq.s32.totalorder %s30, 0
      %p221 = por %p219, %p220
      %s222 = ssub.s32 %s31, %s43
      %s223 = ssub.s32 %s32, %s39
      %s224 = sor.u32 %s222, %s223
      %p225 = scmp.eq.s32.totalorder %s224, 0
      %s227 = sadd.s32 %s226, 1
      %s228 = scalar_select %p225, %s226, %s227
      %p231 = pneg %p225
      %p232 = scmp.eq.s32.totalorder %s24, 1
      %p233 = por %p231, %p232
      %p234 = scmp.ne.s32.totalorder %s226, %s229
      %p235 = scmp.eq.s32.totalorder %s24, 0
      %p236 = por %p234, %p235
      %p237 = scmp.ne.s32.totalorder %s226, %s229
      %p238 = scmp.eq.s32.totalorder %s29, 1
      %p239 = por %p237, %p238
      %p240 = scmp.ne.s32.totalorder %s229, %s230
      %p241 = scmp.eq.s32.totalorder %s29, 0
      %p242 = por %p240, %p241
      %p243 = scmp.ne.s32.totalorder %s229, %s230
      %p244 = scmp.eq.s32.totalorder %s30, 1
      %p245 = por %p243, %p244
      %p247 = scmp.ne.s32.totalorder %s230, %s246
      %p248 = scmp.eq.s32.totalorder %s30, 0
      %p249 = por %p247, %p248
      %p250 = scmp.le.s32.totalorder 1, %s24
      %p251 = scmp.lt.s32.totalorder %s24, 3
      %p252 = pnand %p250, %p251
      %p253 = pneg %p252
      // Predicated region
      $region9: #{tpu_custom_call.1} parent=5 // pred_check
        _
      $region10: #{tpu_custom_call.1} parent=5 // pred_check_branch
        %255 = sbr.rel (%p252) target = $region12
      $region11: #{tpu_custom_call.1} parent=5 // pred_region
        %s256 = ssub.s32 %s24, 1
        // Predicated region
        $region13: #{tpu_custom_call.1} parent=11 // pred_check
          %p257 = pneg %p109
        $region14: #{tpu_custom_call.1} parent=11 // pred_check_branch
          %259 = sbr.rel (%p257) target = $region16
        $region15: #{tpu_custom_call.1} parent=11 // pred_region
          %261 = vsyncadd [#allocation7], 0
          %s262 = sshll.u32 %s2, 4
          %s263 = int_to_ptr.hbm [resolvable:$true] %s262
          %s264 = sshll.u32 [#allocation8], 4
          %s265 = int_to_ptr.vmem [resolvable:$true] %s264
          %270 = dma.hbm_to_vmem [thread:$0]  %s263, 512, %s265, [#allocation7], 128, 128, 8
        $region16: #{tpu_custom_call.1} parent=11 // pred_fallthru
          _
        // Predicated region
        $region17: #{tpu_custom_call.1} parent=11 // pred_check
          %p271 = pneg %p130
        $region18: #{tpu_custom_call.1} parent=11 // pred_check_branch
          %273 = sbr.rel (%p271) target = $region20
        $region19: #{tpu_custom_call.1} parent=11 // pred_region
          _
        $region20: #{tpu_custom_call.1} parent=11 // pred_fallthru
          _
        // Predicated region
        $region21: #{tpu_custom_call.1} parent=11 // pred_check
          %p274 = pneg %p151
        $region22: #{tpu_custom_call.1} parent=11 // pred_check_branch
          %276 = sbr.rel (%p274) target = $region24
        $region23: #{tpu_custom_call.1} parent=11 // pred_region
          %278 = vsyncadd [#allocation10], 0
          %s279 = sshll.u32 %s4, 4
          %s280 = int_to_ptr.hbm [resolvable:$true] %s279
          %s281 = sshll.u32 [#allocation9], 4
          %s282 = int_to_ptr.vmem [resolvable:$true] %s281
          %287 = dma.hbm_to_vmem [thread:$0]  %s280, 512, %s282, [#allocation10], 128, 128, 8
        $region24: #{tpu_custom_call.1} parent=11 // pred_fallthru
          _
        // Predicated region
        $region25: #{tpu_custom_call.1} parent=11 // pred_check
          %p288 = pneg %p172
        $region26: #{tpu_custom_call.1} parent=11 // pred_check_branch
          %290 = sbr.rel (%p288) target = $region28
        $region27: #{tpu_custom_call.1} parent=11 // pred_region
          _
        $region28: #{tpu_custom_call.1} parent=11 // pred_fallthru
          _
        // Predicated region
        $region29: #{tpu_custom_call.1} parent=11 // pred_check
          %p291 = pneg %p193
        $region30: #{tpu_custom_call.1} parent=11 // pred_check_branch
          %293 = sbr.rel (%p291) target = $region32
        $region31: #{tpu_custom_call.1} parent=11 // pred_region
          _
        $region32: #{tpu_custom_call.1} parent=11 // pred_fallthru
          _
        // Predicated region
        $region33: #{tpu_custom_call.1} parent=11 // pred_check
          %p294 = pneg %p214
        $region34: #{tpu_custom_call.1} parent=11 // pred_check_branch
          %296 = sbr.rel (%p294) target = $region36
        $region35: #{tpu_custom_call.1} parent=11 // pred_region
          _
        $region36: #{tpu_custom_call.1} parent=11 // pred_fallthru
          _
      $region12: #{tpu_custom_call.1} parent=5 // pred_fallthru
        _
      %p297 = scmp.lt.s32.totalorder %s24, 2
      // Predicated region
      $region37: #{tpu_custom_call.1} parent=5 // pred_check
        %p298 = pneg %p297
      $region38: #{tpu_custom_call.1} parent=5 // pred_check_branch
        %300 = sbr.rel (%p298) target = $region40
      $region39: #{tpu_custom_call.1} parent=5 // pred_region
        // Predicated region
        $region41: #{tpu_custom_call.1} parent=39 // pred_check
          %p301 = pneg %p56
        $region42: #{tpu_custom_call.1} parent=39 // pred_check_branch
          %303 = sbr.rel (%p301) target = $region44
        $region43: #{tpu_custom_call.1} parent=39 // pred_region
          %s304 = sand.u32 %s46, 1
          %s305 = scalar_lea.sflag [#allocation4], %s304
          %s306 = sand.u32 %s46, 1
          %s307 = smul.addr %s306, 8
          %s308 = scalar_lea.vmem [#allocation3], %s307
          %310 = vsyncadd %s305, 0
          %s311 = smul.addr %s31, 8
          %s312 = scalar_lea.hbm %s0, %s311
          %s314 = sshll.u32 %s312, 4
          %s315 = int_to_ptr.hbm [resolvable:$true] %s314
          %s316 = sshll.u32 %s308, 4
          %s317 = int_to_ptr.vmem [resolvable:$true] %s316
          %319 = dma.hbm_to_vmem [thread:$0]  %s315, 128, %s317, %s305
        $region44: #{tpu_custom_call.1} parent=39 // pred_fallthru
          _
        // Predicated region
        $region45: #{tpu_custom_call.1} parent=39 // pred_check
          %p320 = pneg %p82
        $region46: #{tpu_custom_call.1} parent=39 // pred_check_branch
          %322 = sbr.rel (%p320) target = $region48
        $region47: #{tpu_custom_call.1} parent=39 // pred_region
          %s323 = sand.u32 %s24, 1
          %s324 = scalar_lea.sflag [#allocation7], %s323
          %s325 = sand.u32 %s72, 1
          %s326 = scalar_lea.vmem [#allocation6], %s325
          %328 = vsyncadd %s324, 0
          %s329 = scalar_lea.hbm %s1, %s31
          %s331 = sshll.u32 %s329, 4
          %s332 = int_to_ptr.hbm [resolvable:$true] %s331
          %s333 = sshll.u32 %s326, 4
          %s334 = int_to_ptr.vmem [resolvable:$true] %s333
          %336 = dma.hbm_to_vmem [thread:$0]  %s332, 16, %s334, %s324
        $region48: #{tpu_custom_call.1} parent=39 // pred_fallthru
          _
      $region40: #{tpu_custom_call.1} parent=5 // pred_fallthru
        _
      %p337 = scmp.le.s32.totalorder 1, %s24
      %p338 = scmp.lt.s32.totalorder %s24, 3
      %p339 = pnand %p337, %p338
      %p340 = pneg %p339
      // Predicated region
      $region49: #{tpu_custom_call.1} parent=5 // pred_check
        _
      $region50: #{tpu_custom_call.1} parent=5 // pred_check_branch
        %342 = sbr.rel (%p339) target = $region52
      $region51: #{tpu_custom_call.1} parent=5 // pred_region
        %s343 = ssub.s32 %s24, 1
        %s344 = sand.u32 %s49, 1
        %s345 = scalar_lea.sflag [#allocation4], %s344
        %s346 = sand.u32 %s49, 1
        %s347 = smul.addr %s346, 8
        %s348 = scalar_lea.vmem [#allocation3], %s347
        // Predicated region
        $region53: #{tpu_custom_call.1} parent=51 // pred_check
          %p349 = pneg %p62
        $region54: #{tpu_custom_call.1} parent=51 // pred_check_branch
          %351 = sbr.rel (%p349) target = $region56
        $region55: #{tpu_custom_call.1} parent=51 // pred_region
          %353 = dma.done %s345, 128
        $region56: #{tpu_custom_call.1} parent=51 // pred_fallthru
          _
        %s354 = sand.u32 %s29, 1
        %s355 = scalar_lea.sflag [#allocation7], %s354
        %s356 = sand.u32 %s75, 1
        %s357 = scalar_lea.vmem [#allocation6], %s356
        // Predicated region
        $region57: #{tpu_custom_call.1} parent=51 // pred_check
          %p358 = pneg %p88
        $region58: #{tpu_custom_call.1} parent=51 // pred_check_branch
          %360 = sbr.rel (%p358) target = $region60
        $region59: #{tpu_custom_call.1} parent=51 // pred_region
          %362 = dma.done %s355, 16
        $region60: #{tpu_custom_call.1} parent=51 // pred_fallthru
          _
        // Predicated region
        $region61: #{tpu_custom_call.1} parent=51 // pred_check
          %p363 = pneg %p109
        $region62: #{tpu_custom_call.1} parent=51 // pred_check_branch
          %365 = sbr.rel (%p363) target = $region64
        $region63: #{tpu_custom_call.1} parent=51 // pred_region
          %367 = dma.done [#allocation7], 512
        $region64: #{tpu_custom_call.1} parent=51 // pred_fallthru
          _
        // Predicated region
        $region65: #{tpu_custom_call.1} parent=51 // pred_check
          %p368 = pneg %p151
        $region66: #{tpu_custom_call.1} parent=51 // pred_check_branch
          %370 = sbr.rel (%p368) target = $region68
        $region67: #{tpu_custom_call.1} parent=51 // pred_region
          %372 = dma.done [#allocation10], 512
        $region68: #{tpu_custom_call.1} parent=51 // pred_fallthru
          _
        %s373 = sand.u32 %s49, 1
        %s374 = scalar_lea.sflag [#allocation4], %s373
        %s375 = sand.u32 %s49, 1
        %s376 = smul.addr %s375, 8
        %s377 = scalar_lea.vmem [#allocation3], %s376
        %p378 = pneg %p62
        %p379 = pneg %p59
        %s380 = sand.u32 %s29, 1
        %s381 = scalar_lea.sflag [#allocation7], %s380
        %s382 = sand.u32 %s75, 1
        %s383 = scalar_lea.vmem [#allocation6], %s382
        %p384 = pneg %p88
        %p385 = pneg %p85
        %p386 = pneg %p109
        %p387 = pneg %p106
        %p388 = pneg %p130
        %p389 = pneg %p127
        %p390 = pneg %p151
        %p391 = pneg %p148
        %p392 = pneg %p172
        %p393 = pneg %p169
        %p394 = pneg %p193
        %p395 = pneg %p190
        %p396 = pneg %p214
        %p397 = pneg %p211
        %p398 = pneg %p242
        %p399 = pneg %p239
        %s400 = sand.u32 %s229, 1
        %s401 = scalar_lea.sflag [#allocation5], %s400
        %s402 = sand.u32 %s229, 1
        %s403 = smul.addr %s402, 8
        %s404 = scalar_lea.vmem [#allocation11], %s403
        %p405 = scmp.eq.s32.totalorder %s34, 0
        // Predicated region
        $region69: #{tpu_custom_call.1} parent=51 // pred_check
          %p406 = pneg %p405
        $region70: #{tpu_custom_call.1} parent=51 // pred_check_branch
          %408 = sbr.rel (%p406) target = $region72
        $region71: #{tpu_custom_call.1} parent=51 // pred_region
          %v409 = vld [vmem:[%s348] sm:$0xff]
          %v410 = vld [vmem:[#allocation8] sm:$0xff]
          %v411 = vld [vmem:[#allocation8 + $0x8] sm:$0xff]
          %v412 = vld [vmem:[#allocation8 + $0x10] sm:$0xff]
          %v413 = vld [vmem:[#allocation8 + $0x18] sm:$0xff]
          %v414 = vld [vmem:[%s3] sm:$0x1]
          %v416 = vperm.slane %v414, 0
          %vm418 = vcmask 261120
          %v420 = vsel %vm418, %v409, 0
          %422 = vmatpush.msra.mxu0 0.0
          %423 = vmatpush.msra.mxu0 0.0
          %424 = vmatpush.msra.mxu0 0.0
          %425 = vmatpush.msra.mxu0 0.0
          %426 = vmatpush.msra.mxu0 0.0
          %427 = vmatpush.msra.mxu0 0.0
          %428 = vmatpush.msra.mxu0 0.0
          %429 = vmatpush.msra.mxu0 0.0
          %430 = vmatpush.msra.mxu0 0.0
          %431 = vmatpush.msra.mxu0 0.0
          %432 = vmatpush.msra.mxu0 0.0
          %433 = vmatpush.msra.mxu0 0.0
          %434 = vmatpush.msra.mxu0 %v413
          %435 = vmatpush.msra.mxu0 %v412
          %436 = vmatpush.msra.mxu0 %v411
          %437 = vmatpush.msra.mxu0 %v410
          %438 = vmatmul.f32.gmra.mxu0 %v420
          %v439 = vpop.f32.mrf.mxu0
          %v440 = vadd.f32 %v416, %v439
          %441 = vdwg.mxu0
          %vm442 = vcmask 785408
          %443 = vst.msk [vmem:[#allocation2] sm:$0xff] %vm442, %v440
        $region72: #{tpu_custom_call.1} parent=51 // pred_fallthru
          _
        %s444 = smul.u32 %s34, 8
        %s445 = scalar_lea.vmem [#allocation2], %s444
        %v446 = vld [vmem:[%s445] sm:$0xff]
        %v447 = vld [vmem:[%s357] sm:$0x1]
        %v448 = vld [vmem:[#allocation2] sm:$0xff]
        %v450 = vperm.slane %v447, 0
        %453 = vrot.lane.b32.xlu0 %v448, 96
        %v454 = vpop.permute.xlu0 %453
        %vm455 = vcmask 130048
        %v457 = vsel %vm455, %v446, 0
        %v459 = vsel %vm455, %v454, 0
        %461 = vmatpush.xpose.msra.mxu0 0.0
        %462 = vmatpush.xpose.msra.mxu0 0.0
        %463 = vmatpush.xpose.msra.mxu0 0.0
        %464 = vmatpush.xpose.msra.mxu0 0.0
        %465 = vmatpush.xpose.msra.mxu0 0.0
        %466 = vmatpush.xpose.msra.mxu0 0.0
        %467 = vmatpush.xpose.msra.mxu0 0.0
        %468 = vmatpush.xpose.msra.mxu0 0.0
        %469 = vmatpush.xpose.msra.mxu0 0.0
        %470 = vmatpush.xpose.msra.mxu0 0.0
        %471 = vmatpush.xpose.msra.mxu0 0.0
        %472 = vmatpush.xpose.msra.mxu0 0.0
        %473 = vmatpush.xpose.msra.mxu0 0.0
        %474 = vmatpush.xpose.msra.mxu0 0.0
        %475 = vmatpush.xpose.msra.mxu0 0.0
        %476 = vmatpush.xpose.msra.mxu0 %v459
        %477 = vmatmul.f32.gmra.mxu0 %v457
        %v478 = vpop.f32.mrf.mxu0
        %v479 = vadd.f32 %v450, %v478
        %480 = vdwg.mxu0
        %vm481 = vcmask 64512
        %v482 = vsel %vm481, %v479, -inf
        %483 = vmax.xlane.f32.xlu0 %v482
        %v484 = vpop.xlane.xlu0 %483
        %v485 = vsub.f32 %v479, %v484
        %v486 = vmul.f32 %v485, 1.442695
        %v487 = vpow.pop %v486
        %v488 = vsel %vm481, %v487, 0.0
        %489 = vadd.xlane.f32.xlu0 %v488
        %v490 = vpop.xlane.xlu0 %489
        %491 = vrot.lane.b32.xlu0 %v448, 64
        %v492 = vpop.permute.xlu0 %491
        %v495 = vsel %vm481, %v487, 0
        %497 = vmatpush.msra.mxu0 0.0
        %498 = vmatpush.msra.mxu0 0.0
        %499 = vmatpush.msra.mxu0 0.0
        %500 = vmatpush.msra.mxu0 0.0
        %501 = vmatpush.msra.mxu0 0.0
        %502 = vmatpush.msra.mxu0 0.0
        %503 = vmatpush.msra.mxu0 0.0
        %504 = vmatpush.msra.mxu0 0.0
        %505 = vmatpush.msra.mxu0 0.0
        %506 = vmatpush.msra.mxu0 0.0
        %507 = vmatpush.msra.mxu0 0.0
        %508 = vmatpush.msra.mxu0 0.0
        %509 = vmatpush.msra.mxu0 0.0
        %510 = vmatpush.msra.mxu0 0.0
        %511 = vmatpush.msra.mxu0 0.0
        %512 = vmatpush.msra.mxu0 %v492
        %513 = vmatmul.f32.gmra.mxu0 %v495
        %v514 = vpop.f32.mrf.mxu0
        %v515 = vadd.f32 0.0, %v514
        %516 = vdwg.mxu0
        %v517 = vrcp.pop %v490
        %v518 = vmul.f32 %v490, %v517
        %v519 = vsub.f32 1.0, %v518
        %v520 = vmul.f32 %v517, %v519
        %v521 = vadd.f32 %v517, %v520
        %vm522 = vweird.f32 %v490
        %vm523 = vweird.f32 %v517
        %vm524 = vmor %vm522, %vm523
        %v525 = vsel %vm524, %v517, %v521
        %v526 = vand.u32 2147483647, %v490
        %vm527 = vcmp.eq.f32.partialorder %v526, 8.507059e+37
        %v528 = vand.u32 %v490, 2147483648
        %v529 = vor.u32 1.1754944e-38, %v528
        %v530 = vsel %vm527, %v529, %v525
        %v531 = vmul.f32 %v515, %v530
        %v532 = vld [vmem:[#allocation9] sm:$0xff]
        %v533 = vld [vmem:[#allocation9 + $0x8] sm:$0xff]
        %534 = vrot.lane.b32.xlu0 %v446, 112
        %v535 = vpop.permute.xlu0 %534
        %536 = vrot.lane.b32.xlu0 %v448, 80
        %v537 = vpop.permute.xlu0 %536
        %v538 = vsel %vm455, %v535, 0
        %v540 = vsel %vm455, %v537, 0
        %542 = vmatpush.xpose.msra.mxu0 0.0
        %543 = vmatpush.xpose.msra.mxu0 0.0
        %544 = vmatpush.xpose.msra.mxu0 0.0
        %545 = vmatpush.xpose.msra.mxu0 0.0
        %546 = vmatpush.xpose.msra.mxu0 0.0
        %547 = vmatpush.xpose.msra.mxu0 0.0
        %548 = vmatpush.xpose.msra.mxu0 0.0
        %549 = vmatpush.xpose.msra.mxu0 0.0
        %550 = vmatpush.xpose.msra.mxu0 0.0
        %551 = vmatpush.xpose.msra.mxu0 0.0
        %552 = vmatpush.xpose.msra.mxu0 0.0
        %553 = vmatpush.xpose.msra.mxu0 0.0
        %554 = vmatpush.xpose.msra.mxu0 0.0
        %555 = vmatpush.xpose.msra.mxu0 0.0
        %556 = vmatpush.xpose.msra.mxu0 0.0
        %557 = vmatpush.xpose.msra.mxu0 %v540
        %558 = vmatmul.f32.gmra.mxu0 %v538
        %v559 = vpop.f32.mrf.mxu0
        %v560 = vadd.f32 %v450, %v559
        %561 = vdwg.mxu0
        %v562 = vsel %vm481, %v560, -inf
        %563 = vmax.xlane.f32.xlu0 %v562
        %v564 = vpop.xlane.xlu0 %563
        %v565 = vsub.f32 %v560, %v564
        %v566 = vmul.f32 %v565, 1.442695
        %v567 = vpow.pop %v566
        %v568 = vsel %vm481, %v567, 0.0
        %569 = vadd.xlane.f32.xlu0 %v568
        %v570 = vpop.xlane.xlu0 %569
        %571 = vrot.lane.b32.xlu0 %v448, 48
        %v572 = vpop.permute.xlu0 %571
        %v575 = vsel %vm481, %v567, 0
        %577 = vmatpush.msra.mxu0 0.0
        %578 = vmatpush.msra.mxu0 0.0
        %579 = vmatpush.msra.mxu0 0.0
        %580 = vmatpush.msra.mxu0 0.0
        %581 = vmatpush.msra.mxu0 0.0
        %582 = vmatpush.msra.mxu0 0.0
        %583 = vmatpush.msra.mxu0 0.0
        %584 = vmatpush.msra.mxu0 0.0
        %585 = vmatpush.msra.mxu0 0.0
        %586 = vmatpush.msra.mxu0 0.0
        %587 = vmatpush.msra.mxu0 0.0
        %588 = vmatpush.msra.mxu0 0.0
        %589 = vmatpush.msra.mxu0 0.0
        %590 = vmatpush.msra.mxu0 0.0
        %591 = vmatpush.msra.mxu0 0.0
        %592 = vmatpush.msra.mxu0 %v572
        %593 = vmatmul.f32.gmra.mxu0 %v575
        %v594 = vpop.f32.mrf.mxu0
        %v595 = vadd.f32 0.0, %v594
        %596 = vdwg.mxu0
        %v597 = vrcp.pop %v570
        %v598 = vmul.f32 %v570, %v597
        %v599 = vsub.f32 1.0, %v598
        %v600 = vmul.f32 %v597, %v599
        %v601 = vadd.f32 %v597, %v600
        %vm602 = vweird.f32 %v570
        %vm603 = vweird.f32 %v597
        %vm604 = vmor %vm602, %vm603
        %v605 = vsel %vm604, %v597, %v601
        %v606 = vand.u32 2147483647, %v570
        %vm607 = vcmp.eq.f32.partialorder %v606, 8.507059e+37
        %v608 = vand.u32 %v570, 2147483648
        %v609 = vor.u32 1.1754944e-38, %v608
        %v610 = vsel %vm607, %v609, %v605
        %v611 = vmul.f32 %v595, %v610
        %v612 = vld [vmem:[#allocation9 + $0x10] sm:$0xff]
        %v613 = vld [vmem:[#allocation9 + $0x18] sm:$0xff]
        %v615 = vsel %vm455, %v611, 0
        %617 = vmatpush.msra.mxu0 0.0
        %618 = vmatpush.msra.mxu0 0.0
        %619 = vmatpush.msra.mxu0 0.0
        %620 = vmatpush.msra.mxu0 0.0
        %621 = vmatpush.msra.mxu0 0.0
        %622 = vmatpush.msra.mxu0 0.0
        %623 = vmatpush.msra.mxu0 0.0
        %624 = vmatpush.msra.mxu0 0.0
        %625 = vmatpush.msra.mxu0 0.0
        %626 = vmatpush.msra.mxu0 0.0
        %627 = vmatpush.msra.mxu0 0.0
        %628 = vmatpush.msra.mxu0 0.0
        %629 = vmatpush.msra.mxu0 0.0
        %630 = vmatpush.msra.mxu0 0.0
        %631 = vmatpush.msra.mxu0 %v613
        %632 = vmatpush.msra.mxu0 %v612
        %633 = vmatmul.f32.gmra.mxu0 %v615
        %v634 = vpop.f32.mrf.mxu0
        %v635 = vadd.f32 0.0, %v634
        %636 = vdwg.mxu0
        %v638 = vsel %vm455, %v531, 0
        %640 = vmatpush.msra.mxu0 0.0
        %641 = vmatpush.msra.mxu0 0.0
        %642 = vmatpush.msra.mxu0 0.0
        %643 = vmatpush.msra.mxu0 0.0
        %644 = vmatpush.msra.mxu0 0.0
        %645 = vmatpush.msra.mxu0 0.0
        %646 = vmatpush.msra.mxu0 0.0
        %647 = vmatpush.msra.mxu0 0.0
        %648 = vmatpush.msra.mxu0 0.0
        %649 = vmatpush.msra.mxu0 0.0
        %650 = vmatpush.msra.mxu0 0.0
        %651 = vmatpush.msra.mxu0 0.0
        %652 = vmatpush.msra.mxu0 0.0
        %653 = vmatpush.msra.mxu0 0.0
        %654 = vmatpush.msra.mxu0 %v533
        %655 = vmatpush.msra.mxu0 %v532
        %656 = vmatmul.f32.gmra.mxu0 %v638
        %v657 = vpop.f32.mrf.mxu0
        %v658 = vadd.f32 %v635, %v657
        %659 = vdwg.mxu0
        %v660 = vld [vmem:[%s5] sm:$0x1]
        %v662 = vperm.slane %v660, 0
        %v664 = vadd.f32 %v658, %v662
        %s665 = scalar_lea.vmem %s348, %s444 [#allocation3]
        %v666 = vld [vmem:[%s665] sm:$0xff]
        %v667 = vadd.f32 %v664, %v666
        %vm668 = vcmask 261120
        %v669 = vsel %vm668, %v667, 0.0
        %670 = vadd.xlane.f32.xlu0 %v669
        %v671 = vpop.xlane.xlu0 %670
        %v672 = vrcp.pop 32.0
        %v673 = vmul.f32 32.0, %v672
        %v674 = vsub.f32 1.0, %v673
        %v675 = vmul.f32 %v672, %v674
        %v676 = vadd.f32 %v672, %v675
        %vm677 = vweird.f32 %v672
        %v678 = vsel %vm677, %v672, %v676
        %v679 = vmul.f32 %v671, %v678
        %v680 = vsub.f32 %v667, %v679
        %v681 = vmul.f32 %v680, %v680
        %v682 = vsel %vm668, %v681, 0.0
        %683 = vadd.xlane.f32.xlu0 %v682
        %v684 = vpop.xlane.xlu0 %683
        %v685 = vmul.f32 %v684, %v678
        %v686 = vadd.f32 %v685, 1e-12
        %v687 = vrsqrt.pop %v686
        %v688 = vmul.f32 %v687, %v686
        %v689 = vmul.f32 %v688, %v687
        %v690 = vmul.f32 0.5, %v689
        %v691 = vsub.f32 1.5, %v690
        %v692 = vmul.f32 %v687, %v691
        %vm693 = vweird.f32 %v686
        %vm694 = vweird.f32 %v687
        %vm695 = vmor %vm693, %vm694
        %v696 = vsel %vm695, %v687, %v692
        %v697 = vmul.f32 %v680, %v696
        %v698 = vld [vmem:[%s6] sm:$0x1]
        %v700 = vperm.slane %v698, 0
        %v702 = vmul.f32 %v700, %v697
        %v703 = vld [vmem:[%s7] sm:$0x1]
        %v705 = vperm.slane %v703, 0
        %v707 = vadd.f32 %v702, %v705
        %708 = vst.msk [vmem:[%s404] sm:$0xff] %vm668, %v707
        %s709 = sand.u32 %s229, 1
        %s710 = scalar_lea.sflag [#allocation5], %s709
        %s711 = sand.u32 %s229, 1
        %s712 = smul.addr %s711, 8
        %s713 = scalar_lea.vmem [#allocation11], %s712
        // Predicated region
        $region73: #{tpu_custom_call.1} parent=51 // pred_check
          %p714 = pneg %p239
        $region74: #{tpu_custom_call.1} parent=51 // pred_check_branch
          %716 = sbr.rel (%p714) target = $region76
        $region75: #{tpu_custom_call.1} parent=51 // pred_region
          %718 = vsyncadd %s710, 0
          %s719 = sadd.s32 %s34, %s33
          %s720 = smul.addr %s719, 8
          %s721 = scalar_lea.hbm %s8, %s720
          %s723 = sshll.u32 %s713, 4
          %s724 = int_to_ptr.vmem [resolvable:$true] %s723
          %s725 = sshll.u32 %s721, 4
          %s726 = int_to_ptr.hbm [resolvable:$true] %s725
          %728 = dma.vmem_to_hbm [thread:$0]  %s724, 128, %s726, %s710
        $region76: #{tpu_custom_call.1} parent=51 // pred_fallthru
          _
      $region52: #{tpu_custom_call.1} parent=5 // pred_fallthru
        _
      %p729 = scmp.le.s32.totalorder 2, %s24
      // Predicated region
      $region77: #{tpu_custom_call.1} parent=5 // pred_check
        %p730 = pneg %p729
      $region78: #{tpu_custom_call.1} parent=5 // pred_check_branch
        %732 = sbr.rel (%p730) target = $region80
      $region79: #{tpu_custom_call.1} parent=5 // pred_region
        %s733 = ssub.s32 %s24, 2
        // Predicated region
        $region81: #{tpu_custom_call.1} parent=79 // pred_check
          %p734 = pneg %p245
        $region82: #{tpu_custom_call.1} parent=79 // pred_check_branch
          %736 = sbr.rel (%p734) target = $region84
        $region83: #{tpu_custom_call.1} parent=79 // pred_region
          %s737 = sand.u32 %s230, 1
          %s738 = scalar_lea.sflag [#allocation5], %s737
          %s739 = sand.u32 %s230, 1
          %s740 = smul.addr %s739, 8
          %s741 = scalar_lea.vmem [#allocation11], %s740
          %743 = dma.done %s738, 128
        $region84: #{tpu_custom_call.1} parent=79 // pred_fallthru
          _
      $region80: #{tpu_custom_call.1} parent=5 // pred_fallthru
        _
    $region6: #{tpu_custom_call.1} parent=1 // loop_footer
      %s28 = sadd.s32 1, %s24
    $region7: #{tpu_custom_call.1} parent=1 // loop_footer_branch
      %23 = sbr.rel target = $region3
    $region8: #{tpu_custom_call.1} parent=1 // loop_exit
      _
    %744 = vsyncpa [#allocation4], 1
    %s745 = scalar_lea.sflag [#allocation4], 1
    %746 = vsyncpa %s745, 1
    %747 = vsyncpa [#allocation7], 1
    %s748 = scalar_lea.sflag [#allocation7], 1
    %749 = vsyncpa %s748, 1
    %750 = vsyncpa [#allocation10], 1
    %751 = vsyncpa [#allocation5], 1
    %s752 = scalar_lea.sflag [#allocation5], 1
    %753 = vsyncpa %s752, 1

</llo_original>
